<compile_context>
chip_gen: v7x
topology: tpu7x:2x2x1
jax: 0.10.0
libtpu: 0.0.40
codegen_flags: <defaults>
</compile_context>

<pallas_src>
import jax
import jax.numpy as jnp
from jax.experimental import pallas as pl
from jax.experimental.pallas import tpu as pltpu

ATTN_HIDDEN = 512          # nn.Linear(hidden_size, 512)
INITIALIZER_RANGE = 0.02   # config.initializer_range (BERT-style default)


def _attn_pool_kernel(x_ref, w1_ref, b1_ref, w2_ref, feat_ref,
                      m_sc, l_sc, acc_sc):
    """One (batch tile, seq tile) step of attention pooling with online softmax."""
    s_idx = pl.program_id(1)

    @pl.when(s_idx == 0)
    def _():
        m_sc[...] = jnp.full_like(m_sc, -jnp.inf)
        l_sc[...] = jnp.zeros_like(l_sc)
        acc_sc[...] = jnp.zeros_like(acc_sc)

    TB, TS, H = x_ref.shape
    x = x_ref[...]                                   # keep input dtype for the MXU
    xf = x.reshape(TB * TS, H)

    # Linear(H, 512) + Tanh  -- MXU matmul, f32 accumulate; nonlinearity in f32.
    a = jnp.tanh(
        jnp.dot(xf, w1_ref[...], preferred_element_type=jnp.float32)
        + b1_ref[...]
    )                                                # [TB*TS, 512] f32

    # Linear(512, 1): replace the N=1 matmul with VPU multiply + lane reduce.
    # (b2 omitted: Softmax(dim=1) is shift-invariant, result is unchanged.)
    s = jnp.sum(a.reshape(TB, TS, ATTN_HIDDEN) * w2_ref[...], axis=-1)   # [TB, TS]

    # Online softmax over the seq (reduction) grid axis.
    m_prev = m_sc[...]                                            # [TB, 1]
    m_new = jnp.maximum(m_prev, jnp.max(s, axis=-1, keepdims=True))
    alpha = jnp.exp(m_prev - m_new)                               # [TB, 1]
    p = jnp.exp(s - m_new)                                        # [TB, TS]
    l_sc[...] = alpha * l_sc[...] + jnp.sum(p, axis=-1, keepdims=True)

    # Weighted pooling as an MXU contraction over the seq tile (batched matmul).
    pooled = jnp.einsum(
        'bqt,bth->bqh', p.reshape(TB, 1, TS).astype(x.dtype), x,
        preferred_element_type=jnp.float32,
    )[:, 0, :]                                                    # [TB, H] f32
    acc_sc[...] = alpha * acc_sc[...] + pooled
    m_sc[...] = m_new

    @pl.when(s_idx == pl.num_programs(1) - 1)
    def _():
        inv_l = pl.reciprocal(l_sc[...], approx=False)   # exact; approx=True -> EUP
        feat_ref[...] = (acc_sc[...] * inv_l).astype(feat_ref.dtype)


def _pick_block(dim, preferred):
    """Largest block <= preferred that is a multiple of 8 dividing dim (or dim)."""
    if dim <= preferred:
        return dim
    for cand in range(preferred - preferred % 8, 0, -8):
        if dim % cand == 0:
            return cand
    return dim


def custom_model_head(last_hidden_states, params, *, block_b=None, block_s=None):
    """Pallas implementation of CustomModel.feature + CustomModel.fc (inference)."""
    B, S, H = last_hidden_states.shape
    TB = block_b if block_b is not None else _pick_block(B, 8)
    TS = block_s if block_s is not None else _pick_block(S, 128)
    assert B % TB == 0 and S % TS == 0, "batch/seq must be divisible by block sizes"

    w1, b1, w2 = params["w1"], params["b1"], params["w2"]
    wfc, bfc = params["wfc"], params["bfc"]

    feature = pl.pallas_call(
        _attn_pool_kernel,
        grid=(B // TB, S // TS),
        in_specs=[
            pl.BlockSpec((TB, TS, H), lambda b, s: (b, s, 0)),
            # Weights: block index constant in the seq axis -> stay VMEM resident.
            pl.BlockSpec((H, ATTN_HIDDEN), lambda b, s: (0, 0)),
            pl.BlockSpec((1, ATTN_HIDDEN), lambda b, s: (0, 0)),
            pl.BlockSpec((1, ATTN_HIDDEN), lambda b, s: (0, 0)),
        ],
        out_specs=pl.BlockSpec((TB, H), lambda b, s: (b, 0)),
        out_shape=jax.ShapeDtypeStruct((B, H), jnp.float32),
        scratch_shapes=[
            pltpu.VMEM((TB, 1), jnp.float32),   # running max m
            pltpu.VMEM((TB, 1), jnp.float32),   # running denom l
            pltpu.VMEM((TB, H), jnp.float32),   # running weighted-sum accumulator
        ],
        compiler_params=pltpu.CompilerParams(
            dimension_semantics=("parallel", "arbitrary")),
    )(last_hidden_states, w1, b1, w2)

    # fc_dropout is identity at inference; the [B,H]@[H,1] fc is trivial and its
    # lane-width-1 output would force masked stores inside the kernel -> do it in XLA.
    logits = feature @ wfc + bfc
    return logits, feature


def init_params(key, hidden_size):
    """Deterministic init matching _init_weights: N(0, initializer_range), zero bias."""
    k1, k2, k3 = jax.random.split(key, 3)
    std = INITIALIZER_RANGE
    return {
        "w1":  jax.random.normal(k1, (hidden_size, ATTN_HIDDEN), jnp.float32) * std,
        "b1":  jnp.zeros((1, ATTN_HIDDEN), jnp.float32),
        # Linear(512,1) weight stored as a [1,512] row (PyTorch layout).
        "w2":  jax.random.normal(k2, (1, ATTN_HIDDEN), jnp.float32) * std,
        "b2":  jnp.zeros((1, 1), jnp.float32),
        "wfc": jax.random.normal(k3, (hidden_size, 1), jnp.float32) * std,
        "bfc": jnp.zeros((1, 1), jnp.float32),
    }


def reference_head(x, p):
    """Pure-JAX reference of the same forward pass (for a correctness check)."""
    a = jnp.tanh(x @ p["w1"] + p["b1"])                       # [B,S,512]
    s = jnp.einsum('bsk,k->bs', a, p["w2"][0]) + p["b2"][0, 0]
    w = jax.nn.softmax(s, axis=1)                             # softmax over seq
    feature = jnp.einsum('bs,bsh->bh', w, x)                  # [B,H]
    logits = feature @ p["wfc"] + p["bfc"]                    # [B,1]
    return logits, feature


if __name__ == "__main__":
    # Small demo shapes: batch=2, seq=16, hidden=32; seq block 8 -> the online-softmax
    # reduction loop runs 2 steps per batch tile.
    B, S, H = 2, 16, 32
    key = jax.random.PRNGKey(0)
    kx, kp = jax.random.split(key)

    last_hidden_states = jax.random.normal(kx, (B, S, H), jnp.float32)
    params = init_params(kp, H)

    logits, feature = custom_model_head(last_hidden_states, params, block_s=8)
    logits = jax.block_until_ready(logits)
    feature = jax.block_until_ready(feature)

    ref_logits, ref_feature = reference_head(last_hidden_states, params)
    assert logits.shape == (B, 1) and feature.shape == (B, H)
    assert jnp.allclose(feature, ref_feature, atol=1e-5, rtol=1e-5)
    assert jnp.allclose(logits, ref_logits, atol=1e-5, rtol=1e-5)

    print("KERNEL_OK")
</pallas_src>

<mosaic_0001>
module attributes {stable_mosaic.version = 11 : i64} {
  func.func @_attn_pool_kernel(%arg0: i32, %arg1: i32, %arg2: memref<2x8x32xf32, #tpu.memory_space<vmem>>, %arg3: memref<32x512xf32, #tpu.memory_space<vmem>>, %arg4: memref<1x512xf32, #tpu.memory_space<vmem>>, %arg5: memref<1x512xf32, #tpu.memory_space<vmem>>, %arg6: memref<2x32xf32, #tpu.memory_space<vmem>>, %arg7: memref<2x1xf32, #tpu.memory_space<vmem>>, %arg8: memref<2x1xf32, #tpu.memory_space<vmem>>, %arg9: memref<2x32xf32, #tpu.memory_space<vmem>>) attributes {dimension_semantics = [#tpu.dimension_semantics<parallel>, #tpu.dimension_semantics<arbitrary>], iteration_bounds = array<i64: 1, 2>, scalar_prefetch = 0 : i64, scratch_operands = 3 : i64, tpu.core_type = #tpu.core_type<tc>, window_params = [{transform_indices = @transform_0, window_bounds = array<i64: 2, 8, 32>}, {pipeline_mode = #tpu.pipeline_mode<synchronous>, transform_indices = @transform_1, window_bounds = array<i64: 32, 512>}, {pipeline_mode = #tpu.pipeline_mode<synchronous>, transform_indices = @transform_2, window_bounds = array<i64: 1, 512>}, {pipeline_mode = #tpu.pipeline_mode<synchronous>, transform_indices = @transform_3, window_bounds = array<i64: 1, 512>}, {transform_indices = @transform_4, window_bounds = array<i64: 2, 32>}]} {
    %c0_i32 = arith.constant 0 : i32
    %0 = arith.cmpi eq, %arg1, %c0_i32 : i32
    %1 = arith.extui %0 : i1 to i32
    %c0_i32_0 = arith.constant 0 : i32
    %2 = arith.cmpi ne, %1, %c0_i32_0 : i32
    scf.if %2 {
      %cst_26 = arith.constant 0xFF800000 : f32
      %44 = vector.broadcast %cst_26 : f32 to vector<2x1xf32>
      %c0_27 = arith.constant 0 : index
      %c0_28 = arith.constant 0 : index
      %45 = vector.load %arg7[%c0_27, %c0_28] : memref<2x1xf32, #tpu.memory_space<vmem>>, vector<2x1xf32>
      tpu.vector_store %arg7[%c0_27, %c0_28], %44 {strides = array<i32>} : memref<2x1xf32, #tpu.memory_space<vmem>>, vector<2x1xf32>,
      %cst_29 = arith.constant 0.000000e+00 : f32
      %46 = vector.broadcast %cst_29 : f32 to vector<2x1xf32>
      %c0_30 = arith.constant 0 : index
      %c0_31 = arith.constant 0 : index
      %47 = vector.load %arg8[%c0_30, %c0_31] : memref<2x1xf32, #tpu.memory_space<vmem>>, vector<2x1xf32>
      tpu.vector_store %arg8[%c0_30, %c0_31], %46 {strides = array<i32>} : memref<2x1xf32, #tpu.memory_space<vmem>>, vector<2x1xf32>,
      %cst_32 = arith.constant 0.000000e+00 : f32
      %48 = vector.broadcast %cst_32 : f32 to vector<2x32xf32>
      %c0_33 = arith.constant 0 : index
      %c0_34 = arith.constant 0 : index
      %49 = vector.load %arg9[%c0_33, %c0_34] : memref<2x32xf32, #tpu.memory_space<vmem>>, vector<2x32xf32>
      tpu.vector_store %arg9[%c0_33, %c0_34], %48 {strides = array<i32>} : memref<2x32xf32, #tpu.memory_space<vmem>>, vector<2x32xf32>,
    } else {
    }
    %c0 = arith.constant 0 : index
    %c0_1 = arith.constant 0 : index
    %c0_2 = arith.constant 0 : index
    %3 = vector.load %arg2[%c0, %c0_1, %c0_2] : memref<2x8x32xf32, #tpu.memory_space<vmem>>, vector<2x8x32xf32>
    %4 = vector.shape_cast %3 : vector<2x8x32xf32> to vector<16x32xf32>
    %c0_3 = arith.constant 0 : index
    %c0_4 = arith.constant 0 : index
    %5 = vector.load %arg3[%c0_3, %c0_4] : memref<32x512xf32, #tpu.memory_space<vmem>>, vector<32x512xf32>
    %cst = arith.constant dense<0.000000e+00> : vector<16x512xf32>
    %6 = tpu.matmul %4, %5, %cst {dimension_numbers = #tpu.dot_dimension_numbers<[1], [0], [0], [1], [0, 0, 1, 1], [], []>} : vector<16x32xf32>, vector<32x512xf32>, vector<16x512xf32> -> vector<16x512xf32>
    %c0_5 = arith.constant 0 : index
    %c0_6 = arith.constant 0 : index
    %7 = vector.load %arg4[%c0_5, %c0_6] : memref<1x512xf32, #tpu.memory_space<vmem>>, vector<1x512xf32>
    %8 = vector.broadcast %7 : vector<1x512xf32> to vector<16x512xf32>
    %9 = arith.addf %6, %8 : vector<16x512xf32>
    %10 = math.tanh %9 : vector<16x512xf32>
    %11 = vector.shape_cast %10 : vector<16x512xf32> to vector<2x8x512xf32>
    %c0_7 = arith.constant 0 : index
    %c0_8 = arith.constant 0 : index
    %12 = vector.load %arg5[%c0_7, %c0_8] : memref<1x512xf32, #tpu.memory_space<vmem>>, vector<1x512xf32>
    %13 = vector.shape_cast %12 : vector<1x512xf32> to vector<1x1x512xf32>
    %14 = vector.broadcast %13 : vector<1x1x512xf32> to vector<2x8x512xf32>
    %15 = arith.mulf %11, %14 : vector<2x8x512xf32>
    %cst_9 = arith.constant dense<0.000000e+00> : vector<2x8xf32>
    %16 = vector.multi_reduction <add>, %15, %cst_9 [2] : vector<2x8x512xf32> to vector<2x8xf32>
    %c0_10 = arith.constant 0 : index
    %c0_11 = arith.constant 0 : index
    %17 = vector.load %arg7[%c0_10, %c0_11] : memref<2x1xf32, #tpu.memory_space<vmem>>, vector<2x1xf32>
    %cst_12 = arith.constant dense<0xFF800000> : vector<2xf32>
    %18 = vector.multi_reduction <maximumf>, %16, %cst_12 [1] : vector<2x8xf32> to vector<2xf32>
    %19 = vector.shape_cast %18 : vector<2xf32> to vector<2x1xf32>
    %20 = arith.maximumf %17, %19 : vector<2x1xf32>
    %21 = arith.subf %17, %20 : vector<2x1xf32>
    %22 = math.exp %21 : vector<2x1xf32>
    %23 = vector.broadcast %20 : vector<2x1xf32> to vector<2x8xf32>
    %24 = arith.subf %16, %23 : vector<2x8xf32>
    %25 = math.exp %24 : vector<2x8xf32>
    %c0_13 = arith.constant 0 : index
    %c0_14 = arith.constant 0 : index
    %26 = vector.load %arg8[%c0_13, %c0_14] : memref<2x1xf32, #tpu.memory_space<vmem>>, vector<2x1xf32>
    %27 = arith.mulf %22, %26 : vector<2x1xf32>
    %cst_15 = arith.constant dense<0.000000e+00> : vector<2xf32>
    %28 = vector.multi_reduction <add>, %25, %cst_15 [1] : vector<2x8xf32> to vector<2xf32>
    %29 = vector.shape_cast %28 : vector<2xf32> to vector<2x1xf32>
    %30 = arith.addf %27, %29 : vector<2x1xf32>
    %c0_16 = arith.constant 0 : index
    %c0_17 = arith.constant 0 : index
    %31 = vector.load %arg8[%c0_16, %c0_17] : memref<2x1xf32, #tpu.memory_space<vmem>>, vector<2x1xf32>
    tpu.vector_store %arg8[%c0_16, %c0_17], %30 {strides = array<i32>} : memref<2x1xf32, #tpu.memory_space<vmem>>, vector<2x1xf32>,
    %32 = vector.shape_cast %25 : vector<2x8xf32> to vector<2x1x8xf32>
    "tpu.trace_start"() <{level = 10 : i32, message = "bqt,bth->bqh"}> : () -> ()
    %cst_18 = arith.constant dense<0.000000e+00> : vector<2x1x32xf32>
    %33 = tpu.matmul %32, %3, %cst_18 {dimension_numbers = #tpu.dot_dimension_numbers<[2], [1], [1], [2], [0, 0, 0, 1, 1, 2], [0], [0]>} : vector<2x1x8xf32>, vector<2x8x32xf32>, vector<2x1x32xf32> -> vector<2x1x32xf32>
    "tpu.trace_stop"() : () -> ()
    %34 = vector.shape_cast %33 : vector<2x1x32xf32> to vector<2x32xf32>
    %c0_19 = arith.constant 0 : index
    %c0_20 = arith.constant 0 : index
    %35 = vector.load %arg9[%c0_19, %c0_20] : memref<2x32xf32, #tpu.memory_space<vmem>>, vector<2x32xf32>
    %36 = vector.broadcast %22 : vector<2x1xf32> to vector<2x32xf32>
    %37 = arith.mulf %36, %35 : vector<2x32xf32>
    %38 = arith.addf %37, %34 : vector<2x32xf32>
    %c0_21 = arith.constant 0 : index
    %c0_22 = arith.constant 0 : index
    %39 = vector.load %arg9[%c0_21, %c0_22] : memref<2x32xf32, #tpu.memory_space<vmem>>, vector<2x32xf32>
    tpu.vector_store %arg9[%c0_21, %c0_22], %38 {strides = array<i32>} : memref<2x32xf32, #tpu.memory_space<vmem>>, vector<2x32xf32>,
    %c0_23 = arith.constant 0 : index
    %c0_24 = arith.constant 0 : index
    %40 = vector.load %arg7[%c0_23, %c0_24] : memref<2x1xf32, #tpu.memory_space<vmem>>, vector<2x1xf32>
    tpu.vector_store %arg7[%c0_23, %c0_24], %20 {strides = array<i32>} : memref<2x1xf32, #tpu.memory_space<vmem>>, vector<2x1xf32>,
    %c1_i32 = arith.constant 1 : i32
    %41 = arith.cmpi eq, %arg1, %c1_i32 : i32
    %42 = arith.extui %41 : i1 to i32
    %c0_i32_25 = arith.constant 0 : i32
    %43 = arith.cmpi ne, %42, %c0_i32_25 : i32
    scf.if %43 {
      %c0_26 = arith.constant 0 : index
      %c0_27 = arith.constant 0 : index
      %44 = vector.load %arg8[%c0_26, %c0_27] : memref<2x1xf32, #tpu.memory_space<vmem>>, vector<2x1xf32>
      %45 = tpu.reciprocal %44 : vector<2x1xf32> -> vector<2x1xf32>
      %c0_28 = arith.constant 0 : index
      %c0_29 = arith.constant 0 : index
      %46 = vector.load %arg9[%c0_28, %c0_29] : memref<2x32xf32, #tpu.memory_space<vmem>>, vector<2x32xf32>
      %47 = vector.broadcast %45 : vector<2x1xf32> to vector<2x32xf32>
      %48 = arith.mulf %46, %47 : vector<2x32xf32>
      %c0_30 = arith.constant 0 : index
      %c0_31 = arith.constant 0 : index
      %49 = vector.load %arg6[%c0_30, %c0_31] : memref<2x32xf32, #tpu.memory_space<vmem>>, vector<2x32xf32>
      tpu.vector_store %arg6[%c0_30, %c0_31], %48 {strides = array<i32>} : memref<2x32xf32, #tpu.memory_space<vmem>>, vector<2x32xf32>,
    } else {
    }
    return
  }
  func.func @transform_0(%arg0: i32, %arg1: i32) -> (i32, i32, i32) {
    %c0_i32 = arith.constant 0 : i32
    %c0_i32_0 = arith.constant 0 : i32
    return %arg0, %arg1, %c0_i32 : i32, i32, i32
  }
  func.func @transform_1(%arg0: i32, %arg1: i32) -> (i32, i32) {
    %c0_i32 = arith.constant 0 : i32
    %c0_i32_0 = arith.constant 0 : i32
    %c0_i32_1 = arith.constant 0 : i32
    return %c0_i32, %c0_i32_0 : i32, i32
  }
  func.func @transform_2(%arg0: i32, %arg1: i32) -> (i32, i32) {
    %c0_i32 = arith.constant 0 : i32
    %c0_i32_0 = arith.constant 0 : i32
    %c0_i32_1 = arith.constant 0 : i32
    return %c0_i32, %c0_i32_0 : i32, i32
  }
  func.func @transform_3(%arg0: i32, %arg1: i32) -> (i32, i32) {
    %c0_i32 = arith.constant 0 : i32
    %c0_i32_0 = arith.constant 0 : i32
    %c0_i32_1 = arith.constant 0 : i32
    return %c0_i32, %c0_i32_0 : i32, i32
  }
  func.func @transform_4(%arg0: i32, %arg1: i32) -> (i32, i32) {
    %c0_i32 = arith.constant 0 : i32
    %c0_i32_0 = arith.constant 0 : i32
    return %arg0, %c0_i32 : i32, i32
  }
}

</mosaic_0001>

<llo_original>
// kernel: tpu_custom_call.1
$region0: #{tpu_custom_call.1}
  #allocation0 [shape = 'u32[]', space=smem, size = 0x4, offset = 0x4, fixed_abs, tag = 'smem constant byte address 0x4 - core index']
  #allocation1 [shape = 'u32[144,128]{1,0:T(1,128)}', space=vmem, size = 0x12000, scoped, tag = 'internal scratch']
  #allocation2 [shape = 'f32[2,1]{1,0:T(2,128)}', space=vmem, size = 0x400, scoped, tag = 'scratch operand']
  #allocation3 [shape = 'f32[2,1]{1,0:T(2,128)}', space=vmem, size = 0x400, scoped, tag = 'scratch operand']
  #allocation4 [shape = 'f32[2,32]{1,0:T(2,128)}', space=vmem, size = 0x400, scoped, tag = 'scratch operand']
  %s0 = inlined_call_operand.hbm [shape: f32[2,16,32], index: 0, kind: input, shape index: {}]
  %s1 = inlined_call_operand.hbm [shape: f32[32,512], index: 1, kind: input, shape index: {}]
  %s2 = inlined_call_operand.vmem [shape: f32[1,512], index: 2, kind: input, shape index: {}]
  %s3 = inlined_call_operand.vmem [shape: f32[1,512], index: 3, kind: input, shape index: {}]
  %s4 = inlined_call_operand.hbm [shape: f32[2,32], index: 4, kind: output, shape index: {}]
  %s5 = sld [smem:[#allocation0]]
  $region65: #{tpu_custom_call.1} parent=0
    _
  %s7 = ssub.s32 1, %s5
  %s8 = scalar_select 0, %s7, %s5
  $region1: #{tpu_custom_call.1} parent=0
    #allocation5 [shape = 'u8[16384]{0}', space=vmem, size = 0x4000, scoped, tag = 'input window, operand 0']
    #allocation6 [shape = 's32[2]{0}', space=sflag, size = 0x8, scoped, tag = 'scoped memory for tpu_custom_call.1']
    #allocation7 [shape = 's32[2]{0}', space=sflag, size = 0x8, scoped, tag = 'scoped memory for tpu_custom_call.1']
    #allocation8 [shape = 'u8[65536]{0}', space=vmem, size = 0x10000, scoped, tag = 'input window, operand 1, single buffered']
    #allocation9 [shape = 's32[1]{0}', space=sflag, size = 0x4, scoped, tag = 'scoped memory for tpu_custom_call.1']
    #allocation10 [shape = 'u8[1024]{0}', space=vmem, size = 0x400, scoped, tag = 'output window, operand 0, single buffered']
    %9 = vsyncpa [#allocation6], 0
    %s10 = scalar_lea.sflag [#allocation6], 1
    %11 = vsyncpa %s10, 0
    %12 = vsyncpa [#allocation9], 0
    %13 = vsyncpa [#allocation7], 0
    loop: start=0, step=1, limit=4
    $region2: #{tpu_custom_call.1} parent=1 // loop_pre_header
      _
    $region3: #{tpu_custom_call.1} parent=1 // loop_header
      %s15 = sphi 0, %s19
      %p16 = scmp.ge.s32.totalorder %s15, 4
      %s22 = sphi 0, %s34
      %s23 = sphi 0, %s30
      %s24 = sphi 0, %s22
      %s25 = sphi 0, %s23
      %s26 = sphi 0, %s24
      %s27 = sphi 0, %s25
      %s39 = sphi 0, %s41
      %s42 = sphi 0, %s39
      %s43 = sphi 0, %s42
      %s59 = sphi 0, %s43
      %s63 = sphi 0, %s63
      %s65 = sphi 0, %s63
      %s66 = sphi 0, %s65
      %s80 = sphi 0, %s66
      %s84 = sphi 0, %s84
      %s86 = sphi 0, %s84
      %s87 = sphi 0, %s86
      %s101 = sphi 0, %s87
      %s105 = sphi 0, %s105
      %s107 = sphi 0, %s105
      %s108 = sphi 0, %s107
      %s122 = sphi 0, %s108
      %s128 = sphi 0, %s130
      %s131 = sphi 0, %s128
      %s132 = sphi 0, %s131
      %s148 = sphi 0, %s132
    $region4: #{tpu_custom_call.1} parent=1 // loop_header_branch
      %18 = sbr.rel (%p16) target = $region8
    $region5: #{tpu_custom_call.1} parent=1 // loop_body
      %s20 = ssub.s32 %s15, 1
      %s21 = ssub.s32 %s15, 2
      %s28 = sadd.s32 1, %s23
      %p29 = scmp.ge.s32.totalorder %s28, 2
      %s30 = scalar_select %p29, 0, %s28
      %s31 = sadd.s32 1, %s22
      %s32 = scalar_select %p29, %s31, %s22
      %p33 = scmp.ge.s32.totalorder %s32, 1
      %s34 = scalar_select %p33, 0, %s32
      %s35 = ssub.s32 %s22, %s34
      %s36 = ssub.s32 %s23, %s30
      %s37 = sor.u32 %s35, %s36
      %p38 = scmp.eq.s32.totalorder %s37, 0
      %s40 = sadd.s32 %s39, 1
      %s41 = scalar_select %p38, %s39, %s40
      %p44 = pneg %p38
      %p45 = scmp.eq.s32.totalorder %s15, 1
      %p46 = por %p44, %p45
      %p47 = scmp.ne.s32.totalorder %s39, %s42
      %p48 = scmp.eq.s32.totalorder %s15, 0
      %p49 = por %p47, %p48
      %p50 = scmp.ne.s32.totalorder %s39, %s42
      %p51 = scmp.eq.s32.totalorder %s20, 1
      %p52 = por %p50, %p51
      %p53 = scmp.ne.s32.totalorder %s42, %s43
      %p54 = scmp.eq.s32.totalorder %s20, 0
      %p55 = por %p53, %p54
      %p56 = scmp.ne.s32.totalorder %s42, %s43
      %p57 = scmp.eq.s32.totalorder %s21, 1
      %p58 = por %p56, %p57
      %p60 = scmp.ne.s32.totalorder %s43, %s59
      %p61 = scmp.eq.s32.totalorder %s21, 0
      %p62 = por %p60, %p61
      %s64 = sadd.s32 %s63, 1
      %p67 = scmp.eq.s32.totalorder %s15, 1
      %p68 = scmp.ne.s32.totalorder %s63, %s65
      %p69 = scmp.eq.s32.totalorder %s15, 0
      %p70 = por %p68, %p69
      %p71 = scmp.ne.s32.totalorder %s63, %s65
      %p72 = scmp.eq.s32.totalorder %s20, 1
      %p73 = por %p71, %p72
      %p74 = scmp.ne.s32.totalorder %s65, %s66
      %p75 = scmp.eq.s32.totalorder %s20, 0
      %p76 = por %p74, %p75
      %p77 = scmp.ne.s32.totalorder %s65, %s66
      %p78 = scmp.eq.s32.totalorder %s21, 1
      %p79 = por %p77, %p78
      %p81 = scmp.ne.s32.totalorder %s66, %s80
      %p82 = scmp.eq.s32.totalorder %s21, 0
      %p83 = por %p81, %p82
      %s85 = sadd.s32 %s84, 1
      %p88 = scmp.eq.s32.totalorder %s15, 1
      %p89 = scmp.ne.s32.totalorder %s84, %s86
      %p90 = scmp.eq.s32.totalorder %s15, 0
      %p91 = por %p89, %p90
      %p92 = scmp.ne.s32.totalorder %s84, %s86
      %p93 = scmp.eq.s32.totalorder %s20, 1
      %p94 = por %p92, %p93
      %p95 = scmp.ne.s32.totalorder %s86, %s87
      %p96 = scmp.eq.s32.totalorder %s20, 0
      %p97 = por %p95, %p96
      %p98 = scmp.ne.s32.totalorder %s86, %s87
      %p99 = scmp.eq.s32.totalorder %s21, 1
      %p100 = por %p98, %p99
      %p102 = scmp.ne.s32.totalorder %s87, %s101
      %p103 = scmp.eq.s32.totalorder %s21, 0
      %p104 = por %p102, %p103
      %s106 = sadd.s32 %s105, 1
      %p109 = scmp.eq.s32.totalorder %s15, 1
      %p110 = scmp.ne.s32.totalorder %s105, %s107
      %p111 = scmp.eq.s32.totalorder %s15, 0
      %p112 = por %p110, %p111
      %p113 = scmp.ne.s32.totalorder %s105, %s107
      %p114 = scmp.eq.s32.totalorder %s20, 1
      %p115 = por %p113, %p114
      %p116 = scmp.ne.s32.totalorder %s107, %s108
      %p117 = scmp.eq.s32.totalorder %s20, 0
      %p118 = por %p116, %p117
      %p119 = scmp.ne.s32.totalorder %s107, %s108
      %p120 = scmp.eq.s32.totalorder %s21, 1
      %p121 = por %p119, %p120
      %p123 = scmp.ne.s32.totalorder %s108, %s122
      %p124 = scmp.eq.s32.totalorder %s21, 0
      %p125 = por %p123, %p124
      %s126 = ssub.s32 %s22, %s34
      %p127 = scmp.eq.s32.totalorder %s126, 0
      %s129 = sadd.s32 %s128, 1
      %s130 = scalar_select %p127, %s128, %s129
      %p133 = pneg %p127
      %p134 = scmp.eq.s32.totalorder %s15, 1
      %p135 = por %p133, %p134
      %p136 = scmp.ne.s32.totalorder %s128, %s131
      %p137 = scmp.eq.s32.totalorder %s15, 0
      %p138 = por %p136, %p137
      %p139 = scmp.ne.s32.totalorder %s128, %s131
      %p140 = scmp.eq.s32.totalorder %s20, 1
      %p141 = por %p139, %p140
      %p142 = scmp.ne.s32.totalorder %s131, %s132
      %p143 = scmp.eq.s32.totalorder %s20, 0
      %p144 = por %p142, %p143
      %p145 = scmp.ne.s32.totalorder %s131, %s132
      %p146 = scmp.eq.s32.totalorder %s21, 1
      %p147 = por %p145, %p146
      %p149 = scmp.ne.s32.totalorder %s132, %s148
      %p150 = scmp.eq.s32.totalorder %s21, 0
      %p151 = por %p149, %p150
      %p152 = scmp.le.s32.totalorder 1, %s15
      %p153 = scmp.lt.s32.totalorder %s15, 3
      %p154 = pnand %p152, %p153
      %p155 = pneg %p154
      // Predicated region
      $region9: #{tpu_custom_call.1} parent=5 // pred_check
        _
      $region10: #{tpu_custom_call.1} parent=5 // pred_check_branch
        %157 = sbr.rel (%p154) target = $region12
      $region11: #{tpu_custom_call.1} parent=5 // pred_region
        %s158 = ssub.s32 %s15, 1
        // Predicated region
        $region13: #{tpu_custom_call.1} parent=11 // pred_check
          %p159 = pneg %p76
        $region14: #{tpu_custom_call.1} parent=11 // pred_check_branch
          %161 = sbr.rel (%p159) target = $region16
        $region15: #{tpu_custom_call.1} parent=11 // pred_region
          %s163 = ssub.s32 2048, 2048
          %164 = vsyncadd [#allocation9], %s163
          %s165 = sshll.u32 [#allocation8], 4
          %s166 = int_to_ptr.vmem [resolvable:$true] %s165
          %171 = dma.hbm_to_vmem [thread:$0]  %s1, 2048, %s166, [#allocation9], 512, 512, 32
        $region16: #{tpu_custom_call.1} parent=11 // pred_fallthru
          _
        // Predicated region
        $region17: #{tpu_custom_call.1} parent=11 // pred_check
          %p172 = pneg %p97
        $region18: #{tpu_custom_call.1} parent=11 // pred_check_branch
          %174 = sbr.rel (%p172) target = $region20
        $region19: #{tpu_custom_call.1} parent=11 // pred_region
          _
        $region20: #{tpu_custom_call.1} parent=11 // pred_fallthru
          _
        // Predicated region
        $region21: #{tpu_custom_call.1} parent=11 // pred_check
          %p175 = pneg %p118
        $region22: #{tpu_custom_call.1} parent=11 // pred_check_branch
          %177 = sbr.rel (%p175) target = $region24
        $region23: #{tpu_custom_call.1} parent=11 // pred_region
          _
        $region24: #{tpu_custom_call.1} parent=11 // pred_fallthru
          _
      $region12: #{tpu_custom_call.1} parent=5 // pred_fallthru
        _
      %p178 = scmp.lt.s32.totalorder %s15, 2
      // Predicated region
      $region25: #{tpu_custom_call.1} parent=5 // pred_check
        %p179 = pneg %p178
      $region26: #{tpu_custom_call.1} parent=5 // pred_check_branch
        %181 = sbr.rel (%p179) target = $region28
      $region27: #{tpu_custom_call.1} parent=5 // pred_region
        // Predicated region
        $region29: #{tpu_custom_call.1} parent=27 // pred_check
          %p182 = pneg %p49
        $region30: #{tpu_custom_call.1} parent=27 // pred_check_branch
          %184 = sbr.rel (%p182) target = $region32
        $region31: #{tpu_custom_call.1} parent=27 // pred_region
          %s185 = sand.u32 %s39, 1
          %s186 = scalar_lea.sflag [#allocation6], %s185
          %s187 = sand.u32 %s39, 1
          %s188 = smul.addr %s187, 16
          %s189 = scalar_lea.vmem [#allocation5], %s188
          %s190 = smul.u32 2, %s22
          %s192 = ssub.s32 256, 256
          %193 = vsyncadd %s186, %s192
          %s194 = smul.addr %s190, 2
          %s195 = sadd.s32 %s23, %s194
          %s196 = smul.addr %s195, 128
          %s197 = scalar_lea.hbm %s0, %s196
          %s198 = sshll.u32 %s189, 4
          %s199 = int_to_ptr.vmem [resolvable:$true] %s198
          %204 = dma.hbm_to_vmem [thread:$0]  %s197, 256, %s199, %s186, 256, 128, 8
        $region32: #{tpu_custom_call.1} parent=27 // pred_fallthru
          _
      $region28: #{tpu_custom_call.1} parent=5 // pred_fallthru
        _
      %p205 = scmp.le.s32.totalorder 1, %s15
      %p206 = scmp.lt.s32.totalorder %s15, 3
      %p207 = pnand %p205, %p206
      %p208 = pneg %p207
      // Predicated region
      $region33: #{tpu_custom_call.1} parent=5 // pred_check
        _
      $region34: #{tpu_custom_call.1} parent=5 // pred_check_branch
        %210 = sbr.rel (%p207) target = $region36
      $region35: #{tpu_custom_call.1} parent=5 // pred_region
        %s211 = ssub.s32 %s15, 1
        %s212 = sand.u32 %s42, 1
        %s213 = scalar_lea.sflag [#allocation6], %s212
        %s214 = sand.u32 %s42, 1
        %s215 = smul.addr %s214, 16
        %s216 = scalar_lea.vmem [#allocation5], %s215
        // Predicated region
        $region37: #{tpu_custom_call.1} parent=35 // pred_check
          %p217 = pneg %p55
        $region38: #{tpu_custom_call.1} parent=35 // pred_check_branch
          %219 = sbr.rel (%p217) target = $region40
        $region39: #{tpu_custom_call.1} parent=35 // pred_region
          %220 = dma.done %s213, 256
        $region40: #{tpu_custom_call.1} parent=35 // pred_fallthru
          _
        // Predicated region
        $region41: #{tpu_custom_call.1} parent=35 // pred_check
          %p221 = pneg %p76
        $region42: #{tpu_custom_call.1} parent=35 // pred_check_branch
          %223 = sbr.rel (%p221) target = $region44
        $region43: #{tpu_custom_call.1} parent=35 // pred_region
          %224 = dma.done [#allocation9], 2048
        $region44: #{tpu_custom_call.1} parent=35 // pred_fallthru
          _
        %s225 = sand.u32 %s42, 1
        %s226 = scalar_lea.sflag [#allocation6], %s225
        %s227 = sand.u32 %s42, 1
        %s228 = smul.addr %s227, 16
        %s229 = scalar_lea.vmem [#allocation5], %s228
        %p230 = pneg %p55
        %p231 = pneg %p52
        %p232 = pneg %p76
        %p233 = pneg %p73
        %p234 = pneg %p97
        %p235 = pneg %p94
        %p236 = pneg %p118
        %p237 = pneg %p115
        %p238 = pneg %p144
        %p239 = pneg %p141
        %s240 = smul.u32 2, %s24
        %p241 = scmp.eq.s32.totalorder %s25, 0
        // Predicated region
        $region45: #{tpu_custom_call.1} parent=35 // pred_check
          %p242 = pneg %p241
        $region46: #{tpu_custom_call.1} parent=35 // pred_check_branch
          %244 = sbr.rel (%p242) target = $region48
        $region47: #{tpu_custom_call.1} parent=35 // pred_region
          %vm245 = vcmask 1024
          %246 = vst.msk [vmem:[#allocation2] sm:$0x3] %vm245, -inf
          %247 = vst.msk [vmem:[#allocation3] sm:$0x3] %vm245, 0.0
          %vm248 = vcmask 254976
          %249 = vst.msk [vmem:[#allocation4] sm:$0x3] %vm248, 0.0
        $region48: #{tpu_custom_call.1} parent=35 // pred_fallthru
          _
        %v250 = vld [vmem:[%s216] sm:$0xff]
        %v251 = vld [vmem:[%s216 + $0x8] sm:$0xff]
        %v252 = vld [vmem:[#allocation8] sm:$0xff]
        %v253 = vld [vmem:[#allocation8 + $0x8] sm:$0xff]
        %v254 = vld [vmem:[#allocation8 + $0x10] sm:$0xff]
        %v255 = vld [vmem:[#allocation8 + $0x18] sm:$0xff]
        %v256 = vld [vmem:[#allocation8 + $0x20] sm:$0xff]
        %v257 = vld [vmem:[#allocation8 + $0x28] sm:$0xff]
        %v258 = vld [vmem:[#allocation8 + $0x30] sm:$0xff]
        %v259 = vld [vmem:[#allocation8 + $0x38] sm:$0xff]
        %v260 = vld [vmem:[#allocation8 + $0x40] sm:$0xff]
        %v261 = vld [vmem:[#allocation8 + $0x48] sm:$0xff]
        %v262 = vld [vmem:[#allocation8 + $0x50] sm:$0xff]
        %v263 = vld [vmem:[#allocation8 + $0x58] sm:$0xff]
        %v264 = vld [vmem:[#allocation8 + $0x60] sm:$0xff]
        %v265 = vld [vmem:[#allocation8 + $0x68] sm:$0xff]
        %v266 = vld [vmem:[#allocation8 + $0x70] sm:$0xff]
        %v267 = vld [vmem:[#allocation8 + $0x78] sm:$0xff]
        %v268 = vld [vmem:[%s2] sm:$0xf]
        %v270 = vlaneseq
        %v271 = vshrl.u32 %v270, 7
        %v272 = vsub.s32 0, %v271
        %v273 = vrot.slane %v268, %v272
        %v274 = vlaneseq
        %v275 = vshrl.u32 %v274, 7
        %v276 = vsub.s32 1, %v275
        %v277 = vrot.slane %v268, %v276
        %v278 = vlaneseq
        %v279 = vshrl.u32 %v278, 7
        %v280 = vsub.s32 2, %v279
        %v281 = vrot.slane %v268, %v280
        %v282 = vlaneseq
        %v283 = vshrl.u32 %v282, 7
        %v284 = vsub.s32 3, %v283
        %v285 = vrot.slane %v268, %v284
        %vm290 = vcmask 261120
        %v292 = vsel %vm290, %v250, 0
        %v295 = vsel %vm290, %v251, 0
        %297 = vmatprep.subr.mxu0 %v253
        %298 = vmatpush1.msra.mxu0 %v252
        %299 = vmatprep.subr.mxu0 %v257
        %300 = vmatpush1.msra.mxu0 %v256
        %301 = vmatprep.subr.mxu0 %v261
        %302 = vmatpush1.msra.mxu0 %v260
        %303 = vmatprep.subr.mxu0 %v265
        %304 = vmatpush1.msra.mxu0 %v264
        %305 = vmatprep.subr.mxu0 0.0
        %306 = vmatpush1.msra.mxu0 0.0
        %307 = vmatprep.subr.mxu0 0.0
        %308 = vmatpush1.msra.mxu0 0.0
        %309 = vmatprep.subr.mxu0 0.0
        %310 = vmatpush1.msra.mxu0 0.0
        %311 = vmatprep.subr.mxu0 0.0
        %312 = vmatpush1.msra.mxu0 0.0
        %313 = vmatprep.subr.mxu0 0.0
        %314 = vmatpush1.msra.mxu0 0.0
        %315 = vmatprep.subr.mxu0 0.0
        %316 = vmatpush1.msra.mxu0 0.0
        %317 = vmatprep.subr.mxu0 0.0
        %318 = vmatpush1.msra.mxu0 0.0
        %319 = vmatprep.subr.mxu0 0.0
        %320 = vmatpush1.msra.mxu0 0.0
        %321 = vmatprep.subr.mxu0 0.0
        %322 = vmatpush1.msra.mxu0 0.0
        %323 = vmatprep.subr.mxu0 0.0
        %324 = vmatpush1.msra.mxu0 0.0
        %325 = vmatprep.subr.mxu0 0.0
        %326 = vmatpush1.msra.mxu0 0.0
        %327 = vmatprep.subr.mxu0 0.0
        %328 = vmatpush1.msra.mxu0 0.0
        %329 = vmatprep.subr.mxu0 0.0
        %330 = vmatpush1.msra.mxu0 0.0
        %331 = vmatprep.subr.mxu0 0.0
        %332 = vmatpush1.msra.mxu0 0.0
        %333 = vmatprep.subr.mxu0 0.0
        %334 = vmatpush1.msra.mxu0 0.0
        %335 = vmatprep.subr.mxu0 0.0
        %336 = vmatpush1.msra.mxu0 0.0
        %337 = vmatprep.subr.mxu0 0.0
        %338 = vmatpush1.msra.mxu0 0.0
        %339 = vmatprep.subr.mxu0 0.0
        %340 = vmatpush1.msra.mxu0 0.0
        %341 = vmatprep.subr.mxu0 0.0
        %342 = vmatpush1.msra.mxu0 0.0
        %343 = vmatprep.subr.mxu0 0.0
        %344 = vmatpush1.msra.mxu0 0.0
        %345 = vmatprep.subr.mxu0 0.0
        %346 = vmatpush1.msra.mxu0 0.0
        %347 = vmatprep.subr.mxu0 0.0
        %348 = vmatpush1.msra.mxu0 0.0
        %349 = vmatprep.subr.mxu0 0.0
        %350 = vmatpush1.msra.mxu0 0.0
        %351 = vmatprep.subr.mxu0 0.0
        %352 = vmatpush1.msra.mxu0 0.0
        %353 = vmatprep.subr.mxu0 0.0
        %354 = vmatpush1.msra.mxu0 0.0
        %355 = vmatprep.subr.mxu0 0.0
        %356 = vmatpush1.msra.mxu0 0.0
        %357 = vmatprep.subr.mxu0 0.0
        %358 = vmatpush1.msra.mxu0 0.0
        %359 = vmatprep.subr.mxu0 0.0
        %360 = vmatpush1.msra.mxu0 0.0
        %361 = vmatprep.mubr.f32.mxu0 0.0
        %362 = vmatmul.mubr.f32.gmra.mrb[0].mxu0 %v292
        %v363 = vpop.f32.mrb[0].mxu0
        %v364 = vadd.f32 %v273, %v363
        %v365 = vpop.f32.mrb[0].mxu0
        %v366 = vadd.f32 %v277, %v365
        %367 = vmatprep.mubr.f32.mxu0 0.0
        %368 = vmatmul.mubr.f32.gmra.mrb[0].mxu0 %v295
        %v369 = vpop.f32.mrb[0].mxu0
        %v370 = vadd.f32 %v273, %v369
        %v371 = vpop.f32.mrb[0].mxu0
        %v372 = vadd.f32 %v277, %v371
        %373 = vdwg.mxu0
        %374 = vmatprep.subr.mxu0 %v255
        %375 = vmatpush1.msra.mxu0 %v254
        %376 = vmatprep.subr.mxu0 %v259
        %377 = vmatpush1.msra.mxu0 %v258
        %378 = vmatprep.subr.mxu0 %v263
        %379 = vmatpush1.msra.mxu0 %v262
        %380 = vmatprep.subr.mxu0 %v267
        %381 = vmatpush1.msra.mxu0 %v266
        %382 = vmatprep.subr.mxu0 0.0
        %383 = vmatpush1.msra.mxu0 0.0
        %384 = vmatprep.subr.mxu0 0.0
        %385 = vmatpush1.msra.mxu0 0.0
        %386 = vmatprep.subr.mxu0 0.0
        %387 = vmatpush1.msra.mxu0 0.0
        %388 = vmatprep.subr.mxu0 0.0
        %389 = vmatpush1.msra.mxu0 0.0
        %390 = vmatprep.subr.mxu0 0.0
        %391 = vmatpush1.msra.mxu0 0.0
        %392 = vmatprep.subr.mxu0 0.0
        %393 = vmatpush1.msra.mxu0 0.0
        %394 = vmatprep.subr.mxu0 0.0
        %395 = vmatpush1.msra.mxu0 0.0
        %396 = vmatprep.subr.mxu0 0.0
        %397 = vmatpush1.msra.mxu0 0.0
        %398 = vmatprep.subr.mxu0 0.0
        %399 = vmatpush1.msra.mxu0 0.0
        %400 = vmatprep.subr.mxu0 0.0
        %401 = vmatpush1.msra.mxu0 0.0
        %402 = vmatprep.subr.mxu0 0.0
        %403 = vmatpush1.msra.mxu0 0.0
        %404 = vmatprep.subr.mxu0 0.0
        %405 = vmatpush1.msra.mxu0 0.0
        %406 = vmatprep.subr.mxu0 0.0
        %407 = vmatpush1.msra.mxu0 0.0
        %408 = vmatprep.subr.mxu0 0.0
        %409 = vmatpush1.msra.mxu0 0.0
        %410 = vmatprep.subr.mxu0 0.0
        %411 = vmatpush1.msra.mxu0 0.0
        %412 = vmatprep.subr.mxu0 0.0
        %413 = vmatpush1.msra.mxu0 0.0
        %414 = vmatprep.subr.mxu0 0.0
        %415 = vmatpush1.msra.mxu0 0.0
        %416 = vmatprep.subr.mxu0 0.0
        %417 = vmatpush1.msra.mxu0 0.0
        %418 = vmatprep.subr.mxu0 0.0
        %419 = vmatpush1.msra.mxu0 0.0
        %420 = vmatprep.subr.mxu0 0.0
        %421 = vmatpush1.msra.mxu0 0.0
        %422 = vmatprep.subr.mxu0 0.0
        %423 = vmatpush1.msra.mxu0 0.0
        %424 = vmatprep.subr.mxu0 0.0
        %425 = vmatpush1.msra.mxu0 0.0
        %426 = vmatprep.subr.mxu0 0.0
        %427 = vmatpush1.msra.mxu0 0.0
        %428 = vmatprep.subr.mxu0 0.0
        %429 = vmatpush1.msra.mxu0 0.0
        %430 = vmatprep.subr.mxu0 0.0
        %431 = vmatpush1.msra.mxu0 0.0
        %432 = vmatprep.subr.mxu0 0.0
        %433 = vmatpush1.msra.mxu0 0.0
        %434 = vmatprep.subr.mxu0 0.0
        %435 = vmatpush1.msra.mxu0 0.0
        %436 = vmatprep.subr.mxu0 0.0
        %437 = vmatpush1.msra.mxu0 0.0
        %438 = vmatprep.mubr.f32.mxu0 0.0
        %439 = vmatmul.mubr.f32.gmra.mrb[0].mxu0 %v292
        %v440 = vpop.f32.mrb[0].mxu0
        %v441 = vadd.f32 %v281, %v440
        %v442 = vpop.f32.mrb[0].mxu0
        %v443 = vadd.f32 %v285, %v442
        %444 = vmatprep.mubr.f32.mxu0 0.0
        %445 = vmatmul.mubr.f32.gmra.mrb[0].mxu0 %v295
        %v446 = vpop.f32.mrb[0].mxu0
        %v447 = vadd.f32 %v281, %v446
        %v448 = vpop.f32.mrb[0].mxu0
        %v449 = vadd.f32 %v285, %v448
        %450 = vdwg.mxu0
        %v451 = vtanh.pop %v364
        %v452 = vtanh.pop %v366
        %v453 = vtanh.pop %v441
        %v454 = vtanh.pop %v443
        %v455 = vtanh.pop %v370
        %v456 = vtanh.pop %v372
        %v457 = vtanh.pop %v447
        %v458 = vtanh.pop %v449
        %v459 = vld [vmem:[%s3] sm:$0xf]
        %v461 = vlaneseq
        %v462 = vshrl.u32 %v461, 7
        %v463 = vsub.s32 0, %v462
        %v464 = vrot.slane %v459, %v463
        %v465 = vlaneseq
        %v466 = vshrl.u32 %v465, 7
        %v467 = vsub.s32 1, %v466
        %v468 = vrot.slane %v459, %v467
        %v469 = vlaneseq
        %v470 = vshrl.u32 %v469, 7
        %v471 = vsub.s32 2, %v470
        %v472 = vrot.slane %v459, %v471
        %v473 = vlaneseq
        %v474 = vshrl.u32 %v473, 7
        %v475 = vsub.s32 3, %v474
        %v476 = vrot.slane %v459, %v475
        %v481 = vmul.f32 %v451, %v464
        %v482 = vmul.f32 %v452, %v468
        %v483 = vmul.f32 %v453, %v472
        %v484 = vmul.f32 %v454, %v476
        %v485 = vmul.f32 %v455, %v464
        %v486 = vmul.f32 %v456, %v468
        %v487 = vmul.f32 %v457, %v472
        %v488 = vmul.f32 %v458, %v476
        %v489 = vadd.f32 %v481, %v482
        %v490 = vadd.f32 %v489, %v483
        %v491 = vadd.f32 %v490, %v484
        %492 = vadd.xlane.f32.xlu0 %v491
        %v493 = vpop.xlane.xlu0 %492
        %v494 = vadd.f32 %v485, %v486
        %v495 = vadd.f32 %v494, %v487
        %v496 = vadd.f32 %v495, %v488
        %497 = vadd.xlane.f32.xlu0 %v496
        %v498 = vpop.xlane.xlu0 %497
        %v499 = vld [vmem:[#allocation2] sm:$0x3]
        %v502 = vlaneseq
        %v503 = vand.u32 %v502, 127
        %v504 = vlaneseq
        %v505 = vshrl.u32 %v504, 7
        %v506 = vsub.s32 %v503, %v505
        %v507 = vrot.slane %v493, %v506
        %v508 = vlaneseq
        %v509 = vshrl.u32 %v508, 7
        %v510 = vsub.s32 %v503, %v509
        %v511 = vrot.slane %v498, %v510
        %vm512 = vcmask 1041409
        %v513 = vsel %vm512, %v511, %v507
        %vm515 = vcmask 58368
        %v516 = vsel %vm515, %v513, -inf
        %517 = vmax.xlane.f32.xlu0 %v516
        %v518 = vpop.xlane.xlu0 %517
        %v519 = vmax.f32 %v499, %v518
        %v520 = vsub.f32 %v499, %v519
        %v521 = vmul.f32 %v520, 1.442695
        %v522 = vpow.pop %v521
        %524 = vset.pattern.permute.xlu0 0
        %525 = vperm.xlu0 %524, %v519
        %v526 = vpop.permute.xlu0 %525
        %v527 = vlaneseq
        %v528 = vshrl.u32 %v527, 7
        %v529 = vsub.s32 0, %v528
        %v530 = vrot.slane %v526, %v529
        %v531 = vlaneseq
        %v532 = vshrl.u32 %v531, 7
        %v533 = vsub.s32 1, %v532
        %v534 = vrot.slane %v526, %v533
        %v537 = vsub.f32 %v493, %v530
        %v538 = vsub.f32 %v498, %v534
        %v539 = vmul.f32 %v537, 1.442695
        %v540 = vpow.pop %v539
        %v541 = vmul.f32 %v538, 1.442695
        %v542 = vpow.pop %v541
        %v543 = vld [vmem:[#allocation3] sm:$0x3]
        %v544 = vmul.f32 %v522, %v543
        %547 = vset.pattern.permute.xlu0 0
        %548 = vperm.xlu0 %547, %v540
        %v549 = vpop.permute.xlu0 %548
        %550 = vset.pattern.permute.xlu0 0
        %551 = vperm.xlu0 %550, %v542
        %v552 = vpop.permute.xlu0 %551
        %v553 = vlaneseq
        %v554 = vshrl.u32 %v553, 7
        %v555 = vsub.s32 %v503, %v554
        %v556 = vrot.slane %v549, %v555
        %v557 = vlaneseq
        %v558 = vshrl.u32 %v557, 7
        %v559 = vsub.s32 %v503, %v558
        %v560 = vrot.slane %v552, %v559
        %v561 = vsel %vm512, %v560, %v556
        %v563 = vsel %vm515, %v561, 0.0
        %564 = vadd.xlane.f32.xlu0 %v563
        %v565 = vpop.xlane.xlu0 %564
        %v566 = vadd.f32 %v544, %v565
        %vm567 = vcmask 1024
        %568 = vst.msk [vmem:[#allocation3] sm:$0x3] %vm567, %v566
        %vm569 = vcmask 64512
        %v570 = vsel %vm569, %v556, 0
        %572 = vmatprep.subr.mxu0 0.0
        %573 = vmatpush1.msra.mxu0 %v250
        %574 = vmatprep.subr.mxu0 0.0
        %575 = vmatpush1.msra.mxu0 0.0
        %576 = vmatprep.subr.mxu0 0.0
        %577 = vmatpush1.msra.mxu0 0.0
        %578 = vmatprep.subr.mxu0 0.0
        %579 = vmatpush1.msra.mxu0 0.0
        %580 = vmatprep.subr.mxu0 0.0
        %581 = vmatpush1.msra.mxu0 0.0
        %582 = vmatprep.subr.mxu0 0.0
        %583 = vmatpush1.msra.mxu0 0.0
        %584 = vmatprep.subr.mxu0 0.0
        %585 = vmatpush1.msra.mxu0 0.0
        %586 = vmatprep.subr.mxu0 0.0
        %587 = vmatpush1.msra.mxu0 0.0
        %588 = vmatprep.subr.mxu0 0.0
        %589 = vmatpush1.msra.mxu0 0.0
        %590 = vmatprep.subr.mxu0 0.0
        %591 = vmatpush1.msra.mxu0 0.0
        %592 = vmatprep.subr.mxu0 0.0
        %593 = vmatpush1.msra.mxu0 0.0
        %594 = vmatprep.subr.mxu0 0.0
        %595 = vmatpush1.msra.mxu0 0.0
        %596 = vmatprep.subr.mxu0 0.0
        %597 = vmatpush1.msra.mxu0 0.0
        %598 = vmatprep.subr.mxu0 0.0
        %599 = vmatpush1.msra.mxu0 0.0
        %600 = vmatprep.subr.mxu0 0.0
        %601 = vmatpush1.msra.mxu0 0.0
        %602 = vmatprep.subr.mxu0 0.0
        %603 = vmatpush1.msra.mxu0 0.0
        %604 = vmatprep.subr.mxu0 0.0
        %605 = vmatpush1.msra.mxu0 0.0
        %606 = vmatprep.subr.mxu0 0.0
        %607 = vmatpush1.msra.mxu0 0.0
        %608 = vmatprep.subr.mxu0 0.0
        %609 = vmatpush1.msra.mxu0 0.0
        %610 = vmatprep.subr.mxu0 0.0
        %611 = vmatpush1.msra.mxu0 0.0
        %612 = vmatprep.subr.mxu0 0.0
        %613 = vmatpush1.msra.mxu0 0.0
        %614 = vmatprep.subr.mxu0 0.0
        %615 = vmatpush1.msra.mxu0 0.0
        %616 = vmatprep.subr.mxu0 0.0
        %617 = vmatpush1.msra.mxu0 0.0
        %618 = vmatprep.subr.mxu0 0.0
        %619 = vmatpush1.msra.mxu0 0.0
        %620 = vmatprep.subr.mxu0 0.0
        %621 = vmatpush1.msra.mxu0 0.0
        %622 = vmatprep.subr.mxu0 0.0
        %623 = vmatpush1.msra.mxu0 0.0
        %624 = vmatprep.subr.mxu0 0.0
        %625 = vmatpush1.msra.mxu0 0.0
        %626 = vmatprep.subr.mxu0 0.0
        %627 = vmatpush1.msra.mxu0 0.0
        %628 = vmatprep.subr.mxu0 0.0
        %629 = vmatpush1.msra.mxu0 0.0
        %630 = vmatprep.subr.mxu0 0.0
        %631 = vmatpush1.msra.mxu0 0.0
        %632 = vmatprep.subr.mxu0 0.0
        %633 = vmatpush1.msra.mxu0 0.0
        %634 = vmatprep.subr.mxu0 0.0
        %635 = vmatpush1.msra.mxu0 0.0
        %636 = vmatprep.mubr.f32.mxu0 0.0
        %637 = vmatmul.mubr.f32.gmra.mrb[0].mxu0 %v570
        %v638 = vpop.f32.mrb[0].mxu0
        %v639 = vadd.f32 0.0, %v638
        %v640 = vpop.f32.mrb[0].mxu0
        %641 = vdwg.mxu0
        %v642 = vsel %vm569, %v560, 0
        %644 = vmatprep.subr.mxu0 0.0
        %645 = vmatpush1.msra.mxu0 %v251
        %646 = vmatprep.subr.mxu0 0.0
        %647 = vmatpush1.msra.mxu0 0.0
        %648 = vmatprep.subr.mxu0 0.0
        %649 = vmatpush1.msra.mxu0 0.0
        %650 = vmatprep.subr.mxu0 0.0
        %651 = vmatpush1.msra.mxu0 0.0
        %652 = vmatprep.subr.mxu0 0.0
        %653 = vmatpush1.msra.mxu0 0.0
        %654 = vmatprep.subr.mxu0 0.0
        %655 = vmatpush1.msra.mxu0 0.0
        %656 = vmatprep.subr.mxu0 0.0
        %657 = vmatpush1.msra.mxu0 0.0
        %658 = vmatprep.subr.mxu0 0.0
        %659 = vmatpush1.msra.mxu0 0.0
        %660 = vmatprep.subr.mxu0 0.0
        %661 = vmatpush1.msra.mxu0 0.0
        %662 = vmatprep.subr.mxu0 0.0
        %663 = vmatpush1.msra.mxu0 0.0
        %664 = vmatprep.subr.mxu0 0.0
        %665 = vmatpush1.msra.mxu0 0.0
        %666 = vmatprep.subr.mxu0 0.0
        %667 = vmatpush1.msra.mxu0 0.0
        %668 = vmatprep.subr.mxu0 0.0
        %669 = vmatpush1.msra.mxu0 0.0
        %670 = vmatprep.subr.mxu0 0.0
        %671 = vmatpush1.msra.mxu0 0.0
        %672 = vmatprep.subr.mxu0 0.0
        %673 = vmatpush1.msra.mxu0 0.0
        %674 = vmatprep.subr.mxu0 0.0
        %675 = vmatpush1.msra.mxu0 0.0
        %676 = vmatprep.subr.mxu0 0.0
        %677 = vmatpush1.msra.mxu0 0.0
        %678 = vmatprep.subr.mxu0 0.0
        %679 = vmatpush1.msra.mxu0 0.0
        %680 = vmatprep.subr.mxu0 0.0
        %681 = vmatpush1.msra.mxu0 0.0
        %682 = vmatprep.subr.mxu0 0.0
        %683 = vmatpush1.msra.mxu0 0.0
        %684 = vmatprep.subr.mxu0 0.0
        %685 = vmatpush1.msra.mxu0 0.0
        %686 = vmatprep.subr.mxu0 0.0
        %687 = vmatpush1.msra.mxu0 0.0
        %688 = vmatprep.subr.mxu0 0.0
        %689 = vmatpush1.msra.mxu0 0.0
        %690 = vmatprep.subr.mxu0 0.0
        %691 = vmatpush1.msra.mxu0 0.0
        %692 = vmatprep.subr.mxu0 0.0
        %693 = vmatpush1.msra.mxu0 0.0
        %694 = vmatprep.subr.mxu0 0.0
        %695 = vmatpush1.msra.mxu0 0.0
        %696 = vmatprep.subr.mxu0 0.0
        %697 = vmatpush1.msra.mxu0 0.0
        %698 = vmatprep.subr.mxu0 0.0
        %699 = vmatpush1.msra.mxu0 0.0
        %700 = vmatprep.subr.mxu0 0.0
        %701 = vmatpush1.msra.mxu0 0.0
        %702 = vmatprep.subr.mxu0 0.0
        %703 = vmatpush1.msra.mxu0 0.0
        %704 = vmatprep.subr.mxu0 0.0
        %705 = vmatpush1.msra.mxu0 0.0
        %706 = vmatprep.subr.mxu0 0.0
        %707 = vmatpush1.msra.mxu0 0.0
        %708 = vmatprep.mubr.f32.mxu0 0.0
        %709 = vmatmul.mubr.f32.gmra.mrb[0].mxu0 %v642
        %v710 = vpop.f32.mrb[0].mxu0
        %v711 = vadd.f32 0.0, %v710
        %v712 = vpop.f32.mrb[0].mxu0
        %713 = vdwg.mxu0
        %v714 = vld [vmem:[#allocation4] sm:$0x3]
        %716 = vset.pattern.permute.xlu0 0
        %717 = vperm.xlu0 %716, %v522
        %v718 = vpop.permute.xlu0 %717
        %v720 = vmul.f32 %v718, %v714
        %v723 = vrot.slane %v711, 7
        %v724 = vsel %vm512, %v723, %v639
        %v726 = vadd.f32 %v720, %v724
        %vm727 = vcmask 254976
        %728 = vst.msk [vmem:[#allocation4] sm:$0x3] %vm727, %v726
        %729 = vst.msk [vmem:[#allocation2] sm:$0x3] %vm567, %v519
        %p730 = scmp.eq.s32.totalorder %s25, 1
        // Predicated region
        $region49: #{tpu_custom_call.1} parent=35 // pred_check
          %p731 = pneg %p730
        $region50: #{tpu_custom_call.1} parent=35 // pred_check_branch
          %733 = sbr.rel (%p731) target = $region52
        $region51: #{tpu_custom_call.1} parent=35 // pred_region
          %v734 = vld [vmem:[#allocation3] sm:$0x3]
          %v735 = vrcp.pop %v734
          %v736 = vld [vmem:[#allocation4] sm:$0x3]
          %738 = vset.pattern.permute.xlu0 0
          %739 = vperm.xlu0 %738, %v735
          %v740 = vpop.permute.xlu0 %739
          %v742 = vmul.f32 %v736, %v740
          %743 = vst.msk [vmem:[#allocation10] sm:$0x3] %vm727, %v742
        $region52: #{tpu_custom_call.1} parent=35 // pred_fallthru
          _
        // Predicated region
        $region53: #{tpu_custom_call.1} parent=35 // pred_check
          %p744 = pneg %p141
        $region54: #{tpu_custom_call.1} parent=35 // pred_check_branch
          %746 = sbr.rel (%p744) target = $region56
        $region55: #{tpu_custom_call.1} parent=35 // pred_region
          %s748 = ssub.s32 32, 32
          %749 = vsyncadd [#allocation7], %s748
          %s750 = smul.addr %s24, 32
          %s751 = scalar_lea.hbm %s4, %s750
          %s753 = sshll.u32 [#allocation10], 4
          %s754 = int_to_ptr.vmem [resolvable:$true] %s753
          %756 = dma.vmem_to_hbm [thread:$0]  %s754, 32, %s751, [#allocation7]
        $region56: #{tpu_custom_call.1} parent=35 // pred_fallthru
          _
        // Predicated region
        $region57: #{tpu_custom_call.1} parent=35 // pred_check
          %p757 = pneg %p141
        $region58: #{tpu_custom_call.1} parent=35 // pred_check_branch
          %759 = sbr.rel (%p757) target = $region60
        $region59: #{tpu_custom_call.1} parent=35 // pred_region
          %760 = dma.done [#allocation7], 32
        $region60: #{tpu_custom_call.1} parent=35 // pred_fallthru
          _
      $region36: #{tpu_custom_call.1} parent=5 // pred_fallthru
        _
      %p761 = scmp.le.s32.totalorder 2, %s15
      // Predicated region
      $region61: #{tpu_custom_call.1} parent=5 // pred_check
        %p762 = pneg %p761
      $region62: #{tpu_custom_call.1} parent=5 // pred_check_branch
        %764 = sbr.rel (%p762) target = $region64
      $region63: #{tpu_custom_call.1} parent=5 // pred_region
        %s765 = ssub.s32 %s15, 2
      $region64: #{tpu_custom_call.1} parent=5 // pred_fallthru
        _
    $region6: #{tpu_custom_call.1} parent=1 // loop_footer
      %s19 = sadd.s32 1, %s15
    $region7: #{tpu_custom_call.1} parent=1 // loop_footer_branch
      %14 = sbr.rel target = $region3
    $region8: #{tpu_custom_call.1} parent=1 // loop_exit
      _
    %766 = vsyncpa [#allocation6], 1
    %s767 = scalar_lea.sflag [#allocation6], 1
    %768 = vsyncpa %s767, 1
    %769 = vsyncpa [#allocation9], 1
    %770 = vsyncpa [#allocation7], 1
    %s771 = scalar_lea.sflag [#allocation7], 1
    %772 = vsyncpa %s771, 1

</llo_original>
